<compile_context>
chip_gen: v6e
topology: v6e:2x2x1
jax: 0.10.0
libtpu: 0.0.40
codegen_flags: <defaults>
</compile_context>

<pallas_src>
import jax
import jax.numpy as jnp
from jax.experimental import pallas as pl
from jax.experimental.pallas import tpu as pltpu


def hardshrink_kernel(x_ref, thr_ref, o_ref):
    x = x_ref[...]                      # (tile_rows, C_pad), x.dtype
    thr = thr_ref[...]                  # (1, C_pad), float32 -> broadcasts over rows
    xf = x.astype(jnp.float32)
    # Two separate compares (thresholds may be negative -> both fire -> 2*x),
    # (x + thr < 0) instead of (-x - thr > 0) saves a vector negate.
    pos = (xf - thr > 0).astype(jnp.float32)
    neg = (xf + thr < 0).astype(jnp.float32)
    o_ref[...] = x * (pos + neg).astype(x.dtype)


def _round_up(n: int, m: int) -> int:
    return ((n + m - 1) // m) * m


def hardshrink(x: jax.Array, thresholds: jax.Array, *, tile_rows: int | None = None) -> jax.Array:
    """x: (B, T, C), thresholds: (C,). Returns same shape/dtype as x."""
    B, T, C = x.shape
    rows = B * T
    dtype = x.dtype
    itemsize = jnp.dtype(dtype).itemsize

    # Sublane packing: 8 rows for 32-bit, 16 for bf16, 32 for int8.
    pack = max(1, 32 // (itemsize * 8)) * 8

    # Lane-dense last dim: pad C to a multiple of 128 only when needed.
    C_pad = _round_up(C, 128)

    # Large row tile (~8 MiB per input block) to amortize per-grid-step overhead.
    if tile_rows is None:
        target_block_bytes = 8 * 1024 * 1024
        tile_rows = max(pack, target_block_bytes // (C_pad * itemsize))
    tile_rows = _round_up(tile_rows, pack)
    # Never larger than the (pack-rounded) row count.
    tile_rows = min(tile_rows, _round_up(rows, pack))

    # Keep at least 2 grid steps so both TensorCores participate on v7x.
    num_blocks = (rows + tile_rows - 1) // tile_rows
    while num_blocks < 2 and tile_rows > pack:
        tile_rows = max(pack, _round_up(tile_rows // 2, pack))
        num_blocks = (rows + tile_rows - 1) // tile_rows

    x2d = x.reshape(rows, C)
    if C_pad != C:
        x2d = jnp.pad(x2d, ((0, 0), (0, C_pad - C)))

    # Thresholds stay float32 so the compare matches PyTorch promotion semantics.
    thr = thresholds.astype(jnp.float32)
    if C_pad != C:
        thr = jnp.pad(thr, (0, C_pad - C))
    thr2d = thr.reshape(1, C_pad)

    grid = (num_blocks,)

    cost = pl.CostEstimate(
        flops=6 * rows * C,
        transcendentals=0,
        bytes_accessed=2 * rows * C_pad * itemsize + C_pad * 4,
    )

    out2d = pl.pallas_call(
        hardshrink_kernel,
        out_shape=jax.ShapeDtypeStruct((rows, C_pad), dtype),
        grid_spec=pltpu.PrefetchScalarGridSpec(
            num_scalar_prefetch=0,
            grid=grid,
            in_specs=[
                pl.BlockSpec((tile_rows, C_pad), lambda i: (i, 0)),
                pl.BlockSpec((1, C_pad), lambda i: (0, 0)),
            ],
            out_specs=pl.BlockSpec((tile_rows, C_pad), lambda i: (i, 0)),
        ),
        compiler_params=pltpu.CompilerParams(
            # Row-tile axis is fully independent -> shards across TensorCores on v7x.
            dimension_semantics=("parallel",),
            # Above v5e's 16 MiB scoped default; fits v7x's 64 MiB physical VMEM.
            vmem_limit_bytes=48 * 1024 * 1024,
        ),
        cost_estimate=cost,
    )(x2d, thr2d)

    if C_pad != C:
        out2d = out2d[:, :C]
    return out2d.reshape(B, T, C)


if __name__ == "__main__":
    # Module params (deterministic init, mirrors torch.full((embed_dim,), lambd))
    lambd = 0.5
    embed_dim = 256
    thresholds = jnp.full((embed_dim,), lambd, dtype=jnp.float32)

    # Example input: (batch=2, seq=8, embed_dim=256)
    key = jax.random.PRNGKey(0)
    x = jax.random.normal(key, (2, 8, embed_dim), dtype=jnp.float32)

    out = hardshrink(x, thresholds)
    out = jax.block_until_ready(out)

    # Reference check in plain JAX
    thr = thresholds.reshape(1, 1, embed_dim)
    pos = (x - thr > 0).astype(x.dtype)
    neg = (-x - thr > 0).astype(x.dtype)
    ref = x * pos + x * neg
    assert out.shape == x.shape and out.dtype == x.dtype
    assert bool(jnp.allclose(out, ref)), "mismatch vs reference"

    # TODO(synk): backward pass uses the arctan surrogate gradient (Binarize.backward);
    # only the forward pass is implemented here (wrap in jax.custom_vjp for training).
    print("KERNEL_OK")
</pallas_src>

<mosaic_0001>
module attributes {stable_mosaic.version = 11 : i64} {
  func.func @hardshrink_kernel(%arg0: i32, %arg1: memref<8x256xf32, #tpu.memory_space<vmem>>, %arg2: memref<1x256xf32, #tpu.memory_space<vmem>>, %arg3: memref<8x256xf32, #tpu.memory_space<vmem>>) attributes {dimension_semantics = [#tpu.dimension_semantics<parallel>], iteration_bounds = array<i64: 2>, scalar_prefetch = 0 : i64, scratch_operands = 0 : i64, tpu.core_type = #tpu.core_type<tc>, window_params = [{transform_indices = @transform_0, window_bounds = array<i64: 8, 256>}, {pipeline_mode = #tpu.pipeline_mode<synchronous>, transform_indices = @transform_1, window_bounds = array<i64: 1, 256>}, {transform_indices = @transform_2, window_bounds = array<i64: 8, 256>}]} {
    %c0 = arith.constant 0 : index
    %c0_0 = arith.constant 0 : index
    %0 = vector.load %arg1[%c0, %c0_0] : memref<8x256xf32, #tpu.memory_space<vmem>>, vector<8x256xf32>
    %c0_1 = arith.constant 0 : index
    %c0_2 = arith.constant 0 : index
    %1 = vector.load %arg2[%c0_1, %c0_2] : memref<1x256xf32, #tpu.memory_space<vmem>>, vector<1x256xf32>
    %2 = vector.broadcast %1 : vector<1x256xf32> to vector<8x256xf32>
    %3 = arith.subf %0, %2 : vector<8x256xf32>
    %cst = arith.constant 0.000000e+00 : f32
    %4 = vector.broadcast %cst : f32 to vector<8x256xf32>
    %5 = arith.cmpf ogt, %3, %4 : vector<8x256xf32>
    %6 = arith.extui %5 : vector<8x256xi1> to vector<8x256xi32>
    %7 = arith.sitofp %6 : vector<8x256xi32> to vector<8x256xf32>
    %8 = vector.broadcast %1 : vector<1x256xf32> to vector<8x256xf32>
    %9 = arith.addf %0, %8 : vector<8x256xf32>
    %cst_3 = arith.constant 0.000000e+00 : f32
    %10 = vector.broadcast %cst_3 : f32 to vector<8x256xf32>
    %11 = arith.cmpf olt, %9, %10 : vector<8x256xf32>
    %12 = arith.extui %11 : vector<8x256xi1> to vector<8x256xi32>
    %13 = arith.sitofp %12 : vector<8x256xi32> to vector<8x256xf32>
    %14 = arith.addf %7, %13 : vector<8x256xf32>
    %15 = arith.mulf %0, %14 : vector<8x256xf32>
    %c0_4 = arith.constant 0 : index
    %c0_5 = arith.constant 0 : index
    %16 = vector.load %arg3[%c0_4, %c0_5] : memref<8x256xf32, #tpu.memory_space<vmem>>, vector<8x256xf32>
    tpu.vector_store %arg3[%c0_4, %c0_5], %15 {strides = array<i32>} : memref<8x256xf32, #tpu.memory_space<vmem>>, vector<8x256xf32>,
    return
  }
  func.func @transform_0(%arg0: i32) -> (i32, i32) {
    %c0_i32 = arith.constant 0 : i32
    %c0_i32_0 = arith.constant 0 : i32
    return %arg0, %c0_i32 : i32, i32
  }
  func.func @transform_1(%arg0: i32) -> (i32, i32) {
    %c0_i32 = arith.constant 0 : i32
    %c0_i32_0 = arith.constant 0 : i32
    %c0_i32_1 = arith.constant 0 : i32
    return %c0_i32, %c0_i32_0 : i32, i32
  }
  func.func @transform_2(%arg0: i32) -> (i32, i32) {
    %c0_i32 = arith.constant 0 : i32
    %c0_i32_0 = arith.constant 0 : i32
    return %arg0, %c0_i32 : i32, i32
  }
}

</mosaic_0001>

<llo_original>
// kernel: tpu_custom_call.1
$region0: #{tpu_custom_call.1}
  #allocation0 [shape = 'u32[]', space=smem, size = 0x4, offset = 0x4, fixed_abs, tag = 'smem constant byte address 0x4 - core index']
  #allocation1 [shape = 'u32[144,128]{1,0:T(1,128)}', space=vmem, size = 0x12000, scoped, tag = 'internal scratch']
  %s0 = inlined_call_operand.hbm [shape: f32[16,256], index: 0, kind: input, shape index: {}]
  %s1 = inlined_call_operand.hbm [shape: f32[1,256], index: 1, kind: input, shape index: {}]
  %s2 = inlined_call_operand.hbm [shape: f32[16,256], index: 2, kind: output, shape index: {}]
  %s3 = sld [smem:[#allocation0]]
  $region49: #{tpu_custom_call.1} parent=0
    _
  %s5 = ssub.s32 1, %s3
  %s6 = scalar_select 0, %s5, %s3
  $region1: #{tpu_custom_call.1} parent=0
    #allocation2 [shape = 'u8[16384]{0}', space=vmem, size = 0x4000, scoped, tag = 'input window, operand 0']
    #allocation3 [shape = 's32[2]{0}', space=sflag, size = 0x8, scoped, tag = 'scoped memory for tpu_custom_call.1']
    #allocation4 [shape = 's32[2]{0}', space=sflag, size = 0x8, scoped, tag = 'scoped memory for tpu_custom_call.1']
    #allocation5 [shape = 'u8[1024]{0}', space=vmem, size = 0x400, scoped, tag = 'input window, operand 1, single buffered']
    #allocation6 [shape = 's32[1]{0}', space=sflag, size = 0x4, scoped, tag = 'scoped memory for tpu_custom_call.1']
    #allocation7 [shape = 'u8[16384]{0}', space=vmem, size = 0x4000, scoped, tag = 'output window, operand 0']
    %7 = vsyncpa [#allocation3], 0
    %s8 = scalar_lea.sflag [#allocation3], 1
    %9 = vsyncpa %s8, 0
    %10 = vsyncpa [#allocation6], 0
    %11 = vsyncpa [#allocation4], 0
    %s12 = scalar_lea.sflag [#allocation4], 1
    %13 = vsyncpa %s12, 0
    loop: start=0, step=1, limit=4
    $region2: #{tpu_custom_call.1} parent=1 // loop_pre_header
      _
    $region3: #{tpu_custom_call.1} parent=1 // loop_header
      %s15 = sphi 0, %s19
      %p16 = scmp.ge.s32.totalorder %s15, 4
      %s25 = sphi 0, %s27
      %s28 = sphi 0, %s25
      %s29 = sphi 0, %s28
      %s45 = sphi 0, %s29
      %s49 = sphi 0, %s49
      %s51 = sphi 0, %s49
      %s52 = sphi 0, %s51
      %s66 = sphi 0, %s52
      %s72 = sphi 0, %s74
      %s75 = sphi 0, %s72
      %s76 = sphi 0, %s75
      %s92 = sphi 0, %s76
    $region4: #{tpu_custom_call.1} parent=1 // loop_header_branch
      %18 = sbr.rel (%p16) target = $region8
    $region5: #{tpu_custom_call.1} parent=1 // loop_body
      %s20 = ssub.s32 %s15, 1
      %s21 = ssub.s32 %s15, 2
      %s22 = sadd.s32 %s15, 1
      %s23 = ssub.s32 %s15, %s22
      %p24 = scmp.eq.s32.totalorder %s23, 0
      %s26 = sadd.s32 %s25, 1
      %s27 = scalar_select %p24, %s25, %s26
      %p30 = pneg %p24
      %p31 = scmp.eq.s32.totalorder %s15, 1
      %p32 = por %p30, %p31
      %p33 = scmp.ne.s32.totalorder %s25, %s28
      %p34 = scmp.eq.s32.totalorder %s15, 0
      %p35 = por %p33, %p34
      %p36 = scmp.ne.s32.totalorder %s25, %s28
      %p37 = scmp.eq.s32.totalorder %s20, 1
      %p38 = por %p36, %p37
      %p39 = scmp.ne.s32.totalorder %s28, %s29
      %p40 = scmp.eq.s32.totalorder %s20, 0
      %p41 = por %p39, %p40
      %p42 = scmp.ne.s32.totalorder %s28, %s29
      %p43 = scmp.eq.s32.totalorder %s21, 1
      %p44 = por %p42, %p43
      %p46 = scmp.ne.s32.totalorder %s29, %s45
      %p47 = scmp.eq.s32.totalorder %s21, 0
      %p48 = por %p46, %p47
      %s50 = sadd.s32 %s49, 1
      %p53 = scmp.eq.s32.totalorder %s15, 1
      %p54 = scmp.ne.s32.totalorder %s49, %s51
      %p55 = scmp.eq.s32.totalorder %s15, 0
      %p56 = por %p54, %p55
      %p57 = scmp.ne.s32.totalorder %s49, %s51
      %p58 = scmp.eq.s32.totalorder %s20, 1
      %p59 = por %p57, %p58
      %p60 = scmp.ne.s32.totalorder %s51, %s52
      %p61 = scmp.eq.s32.totalorder %s20, 0
      %p62 = por %p60, %p61
      %p63 = scmp.ne.s32.totalorder %s51, %s52
      %p64 = scmp.eq.s32.totalorder %s21, 1
      %p65 = por %p63, %p64
      %p67 = scmp.ne.s32.totalorder %s52, %s66
      %p68 = scmp.eq.s32.totalorder %s21, 0
      %p69 = por %p67, %p68
      %s70 = ssub.s32 %s15, %s22
      %p71 = scmp.eq.s32.totalorder %s70, 0
      %s73 = sadd.s32 %s72, 1
      %s74 = scalar_select %p71, %s72, %s73
      %p77 = pneg %p71
      %p78 = scmp.eq.s32.totalorder %s15, 1
      %p79 = por %p77, %p78
      %p80 = scmp.ne.s32.totalorder %s72, %s75
      %p81 = scmp.eq.s32.totalorder %s15, 0
      %p82 = por %p80, %p81
      %p83 = scmp.ne.s32.totalorder %s72, %s75
      %p84 = scmp.eq.s32.totalorder %s20, 1
      %p85 = por %p83, %p84
      %p86 = scmp.ne.s32.totalorder %s75, %s76
      %p87 = scmp.eq.s32.totalorder %s20, 0
      %p88 = por %p86, %p87
      %p89 = scmp.ne.s32.totalorder %s75, %s76
      %p90 = scmp.eq.s32.totalorder %s21, 1
      %p91 = por %p89, %p90
      %p93 = scmp.ne.s32.totalorder %s76, %s92
      %p94 = scmp.eq.s32.totalorder %s21, 0
      %p95 = por %p93, %p94
      %p96 = scmp.le.s32.totalorder 1, %s15
      %p97 = scmp.lt.s32.totalorder %s15, 3
      %p98 = pnand %p96, %p97
      %p99 = pneg %p98
      // Predicated region
      $region9: #{tpu_custom_call.1} parent=5 // pred_check
        _
      $region10: #{tpu_custom_call.1} parent=5 // pred_check_branch
        %101 = sbr.rel (%p98) target = $region12
      $region11: #{tpu_custom_call.1} parent=5 // pred_region
        %s102 = ssub.s32 %s15, 1
        // Predicated region
        $region13: #{tpu_custom_call.1} parent=11 // pred_check
          %p103 = pneg %p62
        $region14: #{tpu_custom_call.1} parent=11 // pred_check_branch
          %105 = sbr.rel (%p103) target = $region16
        $region15: #{tpu_custom_call.1} parent=11 // pred_region
          %s107 = ssub.s32 32, 32
          %108 = vsyncadd [#allocation6], %s107
          %s110 = sshll.u32 [#allocation5], 4
          %s111 = int_to_ptr.vmem [resolvable:$true] %s110
          %113 = dma.hbm_to_vmem [thread:$0]  %s1, 32, %s111, [#allocation6]
        $region16: #{tpu_custom_call.1} parent=11 // pred_fallthru
          _
      $region12: #{tpu_custom_call.1} parent=5 // pred_fallthru
        _
      %p114 = scmp.lt.s32.totalorder %s15, 2
      // Predicated region
      $region17: #{tpu_custom_call.1} parent=5 // pred_check
        %p115 = pneg %p114
      $region18: #{tpu_custom_call.1} parent=5 // pred_check_branch
        %117 = sbr.rel (%p115) target = $region20
      $region19: #{tpu_custom_call.1} parent=5 // pred_region
        // Predicated region
        $region21: #{tpu_custom_call.1} parent=19 // pred_check
          %p118 = pneg %p35
        $region22: #{tpu_custom_call.1} parent=19 // pred_check_branch
          %120 = sbr.rel (%p118) target = $region24
        $region23: #{tpu_custom_call.1} parent=19 // pred_region
          %s121 = sand.u32 %s25, 1
          %s122 = scalar_lea.sflag [#allocation3], %s121
          %s123 = sand.u32 %s25, 1
          %s124 = smul.addr %s123, 16
          %s125 = scalar_lea.vmem [#allocation2], %s124
          %s127 = ssub.s32 256, 256
          %128 = vsyncadd %s122, %s127
          %s129 = smul.addr %s15, 2
          %s130 = smul.addr %s129, 128
          %s131 = scalar_lea.hbm %s0, %s130
          %s133 = sshll.u32 %s125, 4
          %s134 = int_to_ptr.vmem [resolvable:$true] %s133
          %136 = dma.hbm_to_vmem [thread:$0]  %s131, 256, %s134, %s122
        $region24: #{tpu_custom_call.1} parent=19 // pred_fallthru
          _
      $region20: #{tpu_custom_call.1} parent=5 // pred_fallthru
        _
      %p137 = scmp.le.s32.totalorder 1, %s15
      %p138 = scmp.lt.s32.totalorder %s15, 3
      %p139 = pnand %p137, %p138
      %p140 = pneg %p139
      // Predicated region
      $region25: #{tpu_custom_call.1} parent=5 // pred_check
        _
      $region26: #{tpu_custom_call.1} parent=5 // pred_check_branch
        %142 = sbr.rel (%p139) target = $region28
      $region27: #{tpu_custom_call.1} parent=5 // pred_region
        %s143 = ssub.s32 %s15, 1
        %s144 = sand.u32 %s28, 1
        %s145 = scalar_lea.sflag [#allocation3], %s144
        %s146 = sand.u32 %s28, 1
        %s147 = smul.addr %s146, 16
        %s148 = scalar_lea.vmem [#allocation2], %s147
        // Predicated region
        $region29: #{tpu_custom_call.1} parent=27 // pred_check
          %p149 = pneg %p41
        $region30: #{tpu_custom_call.1} parent=27 // pred_check_branch
          %151 = sbr.rel (%p149) target = $region32
        $region31: #{tpu_custom_call.1} parent=27 // pred_region
          %152 = dma.done %s145, 256
        $region32: #{tpu_custom_call.1} parent=27 // pred_fallthru
          _
        // Predicated region
        $region33: #{tpu_custom_call.1} parent=27 // pred_check
          %p153 = pneg %p62
        $region34: #{tpu_custom_call.1} parent=27 // pred_check_branch
          %155 = sbr.rel (%p153) target = $region36
        $region35: #{tpu_custom_call.1} parent=27 // pred_region
          %156 = dma.done [#allocation6], 32
        $region36: #{tpu_custom_call.1} parent=27 // pred_fallthru
          _
        %s157 = sand.u32 %s28, 1
        %s158 = scalar_lea.sflag [#allocation3], %s157
        %s159 = sand.u32 %s28, 1
        %s160 = smul.addr %s159, 16
        %s161 = scalar_lea.vmem [#allocation2], %s160
        %p162 = pneg %p41
        %p163 = pneg %p38
        %p164 = pneg %p62
        %p165 = pneg %p59
        %p166 = pneg %p88
        %p167 = pneg %p85
        %s168 = sand.u32 %s75, 1
        %s169 = scalar_lea.sflag [#allocation4], %s168
        %s170 = sand.u32 %s75, 1
        %s171 = smul.addr %s170, 16
        %s172 = scalar_lea.vmem [#allocation7], %s171
        %v173 = vld [vmem:[%s148] sm:$0xff]
        %v174 = vld [vmem:[%s148 + $0x8] sm:$0xff]
        %v175 = vld [vmem:[#allocation5] sm:$0x3]
        %v177 = vlaneseq
        %v178 = vshrl.u32 %v177, 7
        %v179 = vsub.s32 0, %v178
        %v180 = vrot.slane %v175, %v179
        %v181 = vlaneseq
        %v182 = vshrl.u32 %v181, 7
        %v183 = vsub.s32 1, %v182
        %v184 = vrot.slane %v175, %v183
        %v187 = vsub.f32 %v173, %v180
        %v188 = vsub.f32 %v174, %v184
        %vm189 = vcmp.gt.f32.partialorder %v187, 0.0
        %vm190 = vcmp.gt.f32.partialorder %v188, 0.0
        %v191 = vsel %vm189, 1, 0
        %v192 = vsel %vm190, 1, 0
        %v193 = vcvt.s32.f32 %v191
        %v194 = vcvt.s32.f32 %v192
        %v195 = vadd.f32 %v173, %v180
        %v196 = vadd.f32 %v174, %v184
        %vm197 = vcmp.lt.f32.partialorder %v195, 0.0
        %vm198 = vcmp.lt.f32.partialorder %v196, 0.0
        %v199 = vsel %vm197, 1, 0
        %v200 = vsel %vm198, 1, 0
        %v201 = vcvt.s32.f32 %v199
        %v202 = vcvt.s32.f32 %v200
        %v203 = vadd.f32 %v193, %v201
        %v204 = vadd.f32 %v194, %v202
        %v205 = vmul.f32 %v173, %v203
        %v206 = vmul.f32 %v174, %v204
        %207 = vst [vmem:[%s172] sm:$0xff] %v205
        %208 = vst [vmem:[%s172 + $0x8] sm:$0xff] %v206
        %s209 = sand.u32 %s75, 1
        %s210 = scalar_lea.sflag [#allocation4], %s209
        %s211 = sand.u32 %s75, 1
        %s212 = smul.addr %s211, 16
        %s213 = scalar_lea.vmem [#allocation7], %s212
        // Predicated region
        $region37: #{tpu_custom_call.1} parent=27 // pred_check
          %p214 = pneg %p85
        $region38: #{tpu_custom_call.1} parent=27 // pred_check_branch
          %216 = sbr.rel (%p214) target = $region40
        $region39: #{tpu_custom_call.1} parent=27 // pred_region
          %s218 = ssub.s32 256, 256
          %219 = vsyncadd %s210, %s218
          %s220 = smul.addr %s20, 2
          %s221 = smul.addr %s220, 128
          %s222 = scalar_lea.hbm %s2, %s221
          %s224 = sshll.u32 %s213, 4
          %s225 = int_to_ptr.vmem [resolvable:$true] %s224
          %227 = dma.vmem_to_hbm [thread:$0]  %s225, 256, %s222, %s210
        $region40: #{tpu_custom_call.1} parent=27 // pred_fallthru
          _
      $region28: #{tpu_custom_call.1} parent=5 // pred_fallthru
        _
      %p228 = scmp.le.s32.totalorder 2, %s15
      // Predicated region
      $region41: #{tpu_custom_call.1} parent=5 // pred_check
        %p229 = pneg %p228
      $region42: #{tpu_custom_call.1} parent=5 // pred_check_branch
        %231 = sbr.rel (%p229) target = $region44
      $region43: #{tpu_custom_call.1} parent=5 // pred_region
        %s232 = ssub.s32 %s15, 2
        // Predicated region
        $region45: #{tpu_custom_call.1} parent=43 // pred_check
          %p233 = pneg %p91
        $region46: #{tpu_custom_call.1} parent=43 // pred_check_branch
          %235 = sbr.rel (%p233) target = $region48
        $region47: #{tpu_custom_call.1} parent=43 // pred_region
          %s236 = sand.u32 %s76, 1
          %s237 = scalar_lea.sflag [#allocation4], %s236
          %s238 = sand.u32 %s76, 1
          %s239 = smul.addr %s238, 16
          %s240 = scalar_lea.vmem [#allocation7], %s239
          %241 = dma.done %s237, 256
        $region48: #{tpu_custom_call.1} parent=43 // pred_fallthru
          _
      $region44: #{tpu_custom_call.1} parent=5 // pred_fallthru
        _
    $region6: #{tpu_custom_call.1} parent=1 // loop_footer
      %s19 = sadd.s32 1, %s15
    $region7: #{tpu_custom_call.1} parent=1 // loop_footer_branch
      %14 = sbr.rel target = $region3
    $region8: #{tpu_custom_call.1} parent=1 // loop_exit
      _
    %242 = vsyncpa [#allocation3], 1
    %s243 = scalar_lea.sflag [#allocation3], 1
    %244 = vsyncpa %s243, 1
    %245 = vsyncpa [#allocation6], 1
    %246 = vsyncpa [#allocation4], 1
    %s247 = scalar_lea.sflag [#allocation4], 1
    %248 = vsyncpa %s247, 1

</llo_original>
